<compile_context>
chip_gen: v7x
topology: tpu7x:2x2x1
jax: 0.10.0
libtpu: 0.0.40
codegen_flags: <defaults>
</compile_context>

<pallas_src>
import functools

import jax
import jax.numpy as jnp
from jax.experimental import pallas as pl
from jax.experimental.pallas import tpu as pltpu


def _se_kernel(p_ref, x_ref, o_ref, *, N, C, I,
               off_wdt, off_wu, off_ws, off_bu, off_bs, off_bd):
    """p_ref: (8,128) packed params; x_ref/o_ref: (N*C, HW) activation slab."""
    # Static sub-slices of the single packed parameter tile (one dense DMA).
    wdT = p_ref[0:C, off_wdt:off_wdt + I]      # (C, I)  = w_down^T
    wu  = p_ref[0:C, off_wu:off_wu + I]        # (C, I)  = w_up
    ws  = p_ref[0:C, off_ws:off_ws + C]        # (C, C)  = w_se
    bu  = p_ref[0:C, off_bu:off_bu + 1]        # (C, 1)  = b_up   (column)
    bs  = p_ref[0:C, off_bs:off_bs + 1]        # (C, 1)  = b_se   (column)
    bd  = p_ref[0:1, off_bd:off_bd + I]        # (1, I)  = b_down (row)

    x = x_ref[...]                             # (N*C, HW) f32, spatial on lanes

    for n in range(N):                         # N is tiny & static: unrolled
        xb = x[n * C:(n + 1) * C, :]           # (C, HW) slab of batch n

        # squeeze: global average pool over the spatial (lane) axis
        s = jnp.mean(xb, axis=-1, keepdims=True)                  # (C, 1)

        # down 1x1 conv (C -> I) + bias + ReLU  (K = C sublane reduce, VPU)
        h = jnp.sum(wdT * s, axis=0, keepdims=True) + bd          # (1, I)
        h = jnp.maximum(h, 0.0)

        # up 1x1 conv (I -> C) + bias + sigmoid (K = I lane reduce; EUP sigmoid)
        u = jnp.sum(wu * h, axis=1, keepdims=True) + bu           # (C, 1)
        scale = jax.nn.sigmoid(u)                                 # (C, 1)

        # conv_se with the per-input-channel sigmoid scale folded into the
        # weight column and b_se folded into the first FMA: the full-res slab
        # is read once and written once, no extra elementwise passes.
        acc = (ws[:, 0:1] * scale[0:1, :]) * xb[0:1, :] + bs      # (C, HW)
        for c in range(1, C):                  # static unroll, C is tiny
            acc = acc + (ws[:, c:c + 1] * scale[c:c + 1, :]) * xb[c:c + 1, :]

        o_ref[n * C:(n + 1) * C, :] = acc.astype(o_ref.dtype)


def se_block(x, w_down, b_down, w_up, b_up, w_se, b_se):
    """x: (N, C, H, W) f32; 1x1-conv weights squeezed to 2-D (out, in)."""
    N, C, H, W = x.shape
    HW = H * W
    I = w_down.shape[0]
    NC = N * C

    # Column offsets inside the single packed (8, 128) f32 parameter slab.
    off_wdt = 0
    off_wu = off_wdt + I
    off_ws = off_wu + I
    off_bu = off_ws + C
    off_bs = off_bu + 1
    off_bd = off_bs + 1
    assert C <= 8 and off_bd + I <= 128, "toy-size parameter packing only"

    f32 = jnp.float32
    params = jnp.zeros((8, 128), f32)
    params = params.at[0:C, off_wdt:off_wdt + I].set(w_down.T.astype(f32))
    params = params.at[0:C, off_wu:off_wu + I].set(w_up.astype(f32))
    params = params.at[0:C, off_ws:off_ws + C].set(w_se.astype(f32))
    params = params.at[0:C, off_bu:off_bu + 1].set(b_up.reshape(C, 1).astype(f32))
    params = params.at[0:C, off_bs:off_bs + 1].set(b_se.reshape(C, 1).astype(f32))
    params = params.at[0:1, off_bd:off_bd + I].set(b_down.reshape(1, I).astype(f32))

    x2 = x.reshape(NC, HW)   # (8, 256): dense full (8,128) f32 tiles

    kernel = functools.partial(
        _se_kernel, N=N, C=C, I=I,
        off_wdt=off_wdt, off_wu=off_wu, off_ws=off_ws,
        off_bu=off_bu, off_bs=off_bs, off_bd=off_bd)

    # No grid: single invocation, whole arrays resident in VMEM, no pipeline
    # prologue/epilogue, no double buffers for this ~12 KiB problem.
    # (input_output_aliases={1: 0} would also be legal here; omitted to keep
    #  the eager-mode test inputs untouched.)
    out2 = pl.pallas_call(
        kernel,
        out_shape=jax.ShapeDtypeStruct((NC, HW), x.dtype),
        in_specs=[
            pl.BlockSpec(memory_space=pltpu.MemorySpace.VMEM),  # packed params
            pl.BlockSpec(memory_space=pltpu.MemorySpace.VMEM),  # activations
        ],
        out_specs=pl.BlockSpec(memory_space=pltpu.MemorySpace.VMEM),
    )(params, x2)

    return out2.reshape(N, C, H, W)


def se_block_reference(x, w_down, b_down, w_up, b_up, w_se, b_se):
    """Pure-JAX reference matching the PyTorch SEBlock forward."""
    s = jnp.mean(x, axis=(2, 3), keepdims=True)                          # (N,C,1,1)
    h = jnp.einsum('oc,ncij->noij', w_down, s) + b_down[None, :, None, None]
    h = jax.nn.relu(h)
    u = jnp.einsum('oc,ncij->noij', w_up, h) + b_up[None, :, None, None]
    scale = jax.nn.sigmoid(u)
    y = x * scale
    out = jnp.einsum('oc,nchw->nohw', w_se, y) + b_se[None, :, None, None]
    return out


if __name__ == "__main__":
    # Module hyperparams (synthetic, deterministic)
    input_channels = 4
    internal_neurons = 2
    N, H, W = 2, 16, 16

    key = jax.random.PRNGKey(0)
    kx, k1, k2, k3, k4, k5, k6 = jax.random.split(key, 7)

    x = jax.random.normal(kx, (N, input_channels, H, W), dtype=jnp.float32)

    # 1x1 conv weights (PyTorch shape (out, in, 1, 1) squeezed to (out, in))
    w_down = jax.random.normal(k1, (internal_neurons, input_channels), jnp.float32) * 0.5
    b_down = jax.random.normal(k2, (internal_neurons,), jnp.float32) * 0.1
    w_up   = jax.random.normal(k3, (input_channels, internal_neurons), jnp.float32) * 0.5
    b_up   = jax.random.normal(k4, (input_channels,), jnp.float32) * 0.1
    w_se   = jax.random.normal(k5, (input_channels, input_channels), jnp.float32) * 0.5
    b_se   = jax.random.normal(k6, (input_channels,), jnp.float32) * 0.1

    out = se_block(x, w_down, b_down, w_up, b_up, w_se, b_se)
    out = jax.block_until_ready(out)

    ref = se_block_reference(x, w_down, b_down, w_up, b_up, w_se, b_se)
    assert out.shape == (N, input_channels, H, W)
    assert jnp.allclose(out, ref, atol=1e-5, rtol=1e-5), "mismatch vs reference"

    print("KERNEL_OK")
</pallas_src>

<mosaic_0001>
module attributes {stable_mosaic.version = 11 : i64} {
  func.func @_se_kernel(%arg0: memref<8x128xf32, #tpu.memory_space<vmem>>, %arg1: memref<8x256xf32, #tpu.memory_space<vmem>>, %arg2: memref<8x256xf32, #tpu.memory_space<vmem>>) attributes {dimension_semantics = [], scalar_prefetch = 0 : i64, scratch_operands = 0 : i64, tpu.core_type = #tpu.core_type<tc>} {
    %c0 = arith.constant 0 : index
    %c0_0 = arith.constant 0 : index
    %0 = vector.load %arg0[%c0, %c0_0] : memref<8x128xf32, #tpu.memory_space<vmem>>, vector<4x2xf32>
    %c0_1 = arith.constant 0 : index
    %c2 = arith.constant 2 : index
    %1 = vector.load %arg0[%c0_1, %c2] : memref<8x128xf32, #tpu.memory_space<vmem>>, vector<4x2xf32>
    %c0_2 = arith.constant 0 : index
    %c4 = arith.constant 4 : index
    %2 = vector.load %arg0[%c0_2, %c4] : memref<8x128xf32, #tpu.memory_space<vmem>>, vector<4x4xf32>
    %c0_3 = arith.constant 0 : index
    %c8 = arith.constant 8 : index
    %3 = vector.load %arg0[%c0_3, %c8] : memref<8x128xf32, #tpu.memory_space<vmem>>, vector<4x1xf32>
    %c0_4 = arith.constant 0 : index
    %c9 = arith.constant 9 : index
    %4 = vector.load %arg0[%c0_4, %c9] : memref<8x128xf32, #tpu.memory_space<vmem>>, vector<4x1xf32>
    %c0_5 = arith.constant 0 : index
    %c10 = arith.constant 10 : index
    %5 = vector.load %arg0[%c0_5, %c10] : memref<8x128xf32, #tpu.memory_space<vmem>>, vector<1x2xf32>
    %c0_6 = arith.constant 0 : index
    %c0_7 = arith.constant 0 : index
    %6 = vector.load %arg1[%c0_6, %c0_7] : memref<8x256xf32, #tpu.memory_space<vmem>>, vector<8x256xf32>
    %7 = vector.extract_strided_slice %6 {offsets = [0, 0], sizes = [4, 256], strides = [1, 1]} : vector<8x256xf32> to vector<4x256xf32>
    %cst = arith.constant dense<0.000000e+00> : vector<4xf32>
    %8 = vector.multi_reduction <add>, %7, %cst [1] : vector<4x256xf32> to vector<4xf32>
    %9 = vector.shape_cast %8 : vector<4xf32> to vector<4x1xf32>
    %cst_8 = arith.constant 2.560000e+02 : f32
    %10 = vector.broadcast %cst_8 : f32 to vector<4x1xf32>
    %11 = arith.divf %9, %10 : vector<4x1xf32>
    %12 = vector.broadcast %11 : vector<4x1xf32> to vector<4x2xf32>
    %13 = arith.mulf %0, %12 : vector<4x2xf32>
    %cst_9 = arith.constant dense<0.000000e+00> : vector<2xf32>
    %14 = vector.multi_reduction <add>, %13, %cst_9 [0] : vector<4x2xf32> to vector<2xf32>
    %15 = vector.shape_cast %14 : vector<2xf32> to vector<1x2xf32>
    %16 = arith.addf %15, %5 : vector<1x2xf32>
    %cst_10 = arith.constant 0.000000e+00 : f32
    %17 = vector.broadcast %cst_10 : f32 to vector<1x2xf32>
    %18 = arith.maximumf %16, %17 : vector<1x2xf32>
    %19 = vector.broadcast %18 : vector<1x2xf32> to vector<4x2xf32>
    %20 = arith.mulf %1, %19 : vector<4x2xf32>
    %cst_11 = arith.constant dense<0.000000e+00> : vector<4xf32>
    %21 = vector.multi_reduction <add>, %20, %cst_11 [1] : vector<4x2xf32> to vector<4xf32>
    %22 = vector.shape_cast %21 : vector<4xf32> to vector<4x1xf32>
    %23 = arith.addf %22, %3 : vector<4x1xf32>
    %24 = arith.negf %23 : vector<4x1xf32>
    %25 = math.exp %24 : vector<4x1xf32>
    %cst_12 = arith.constant 1.000000e+00 : f32
    %26 = vector.broadcast %cst_12 : f32 to vector<4x1xf32>
    %27 = arith.addf %26, %25 : vector<4x1xf32>
    %28 = arith.divf %26, %27 : vector<4x1xf32>
    %29 = vector.extract_strided_slice %2 {offsets = [0, 0], sizes = [4, 1], strides = [1, 1]} : vector<4x4xf32> to vector<4x1xf32>
    %30 = vector.extract_strided_slice %28 {offsets = [0, 0], sizes = [1, 1], strides = [1, 1]} : vector<4x1xf32> to vector<1x1xf32>
    %31 = vector.broadcast %30 : vector<1x1xf32> to vector<4x1xf32>
    %32 = arith.mulf %29, %31 : vector<4x1xf32>
    %33 = vector.extract_strided_slice %7 {offsets = [0, 0], sizes = [1, 256], strides = [1, 1]} : vector<4x256xf32> to vector<1x256xf32>
    %34 = vector.broadcast %32 : vector<4x1xf32> to vector<4x256xf32>
    %35 = vector.broadcast %33 : vector<1x256xf32> to vector<4x256xf32>
    %36 = arith.mulf %34, %35 : vector<4x256xf32>
    %37 = vector.broadcast %4 : vector<4x1xf32> to vector<4x256xf32>
    %38 = arith.addf %36, %37 : vector<4x256xf32>
    %39 = vector.extract_strided_slice %2 {offsets = [0, 1], sizes = [4, 1], strides = [1, 1]} : vector<4x4xf32> to vector<4x1xf32>
    %40 = vector.extract_strided_slice %28 {offsets = [1, 0], sizes = [1, 1], strides = [1, 1]} : vector<4x1xf32> to vector<1x1xf32>
    %41 = vector.broadcast %40 : vector<1x1xf32> to vector<4x1xf32>
    %42 = arith.mulf %39, %41 : vector<4x1xf32>
    %43 = vector.extract_strided_slice %7 {offsets = [1, 0], sizes = [1, 256], strides = [1, 1]} : vector<4x256xf32> to vector<1x256xf32>
    %44 = vector.broadcast %42 : vector<4x1xf32> to vector<4x256xf32>
    %45 = vector.broadcast %43 : vector<1x256xf32> to vector<4x256xf32>
    %46 = arith.mulf %44, %45 : vector<4x256xf32>
    %47 = arith.addf %38, %46 : vector<4x256xf32>
    %48 = vector.extract_strided_slice %2 {offsets = [0, 2], sizes = [4, 1], strides = [1, 1]} : vector<4x4xf32> to vector<4x1xf32>
    %49 = vector.extract_strided_slice %28 {offsets = [2, 0], sizes = [1, 1], strides = [1, 1]} : vector<4x1xf32> to vector<1x1xf32>
    %50 = vector.broadcast %49 : vector<1x1xf32> to vector<4x1xf32>
    %51 = arith.mulf %48, %50 : vector<4x1xf32>
    %52 = vector.extract_strided_slice %7 {offsets = [2, 0], sizes = [1, 256], strides = [1, 1]} : vector<4x256xf32> to vector<1x256xf32>
    %53 = vector.broadcast %51 : vector<4x1xf32> to vector<4x256xf32>
    %54 = vector.broadcast %52 : vector<1x256xf32> to vector<4x256xf32>
    %55 = arith.mulf %53, %54 : vector<4x256xf32>
    %56 = arith.addf %47, %55 : vector<4x256xf32>
    %57 = vector.extract_strided_slice %2 {offsets = [0, 3], sizes = [4, 1], strides = [1, 1]} : vector<4x4xf32> to vector<4x1xf32>
    %58 = vector.extract_strided_slice %28 {offsets = [3, 0], sizes = [1, 1], strides = [1, 1]} : vector<4x1xf32> to vector<1x1xf32>
    %59 = vector.broadcast %58 : vector<1x1xf32> to vector<4x1xf32>
    %60 = arith.mulf %57, %59 : vector<4x1xf32>
    %61 = vector.extract_strided_slice %7 {offsets = [3, 0], sizes = [1, 256], strides = [1, 1]} : vector<4x256xf32> to vector<1x256xf32>
    %62 = vector.broadcast %60 : vector<4x1xf32> to vector<4x256xf32>
    %63 = vector.broadcast %61 : vector<1x256xf32> to vector<4x256xf32>
    %64 = arith.mulf %62, %63 : vector<4x256xf32>
    %65 = arith.addf %56, %64 : vector<4x256xf32>
    %c0_13 = arith.constant 0 : index
    %c0_14 = arith.constant 0 : index
    %66 = vector.load %arg2[%c0_13, %c0_14] : memref<8x256xf32, #tpu.memory_space<vmem>>, vector<4x256xf32>
    tpu.vector_store %arg2[%c0_13, %c0_14], %65 {strides = array<i32>} : memref<8x256xf32, #tpu.memory_space<vmem>>, vector<4x256xf32>,
    %67 = vector.extract_strided_slice %6 {offsets = [4, 0], sizes = [4, 256], strides = [1, 1]} : vector<8x256xf32> to vector<4x256xf32>
    %cst_15 = arith.constant dense<0.000000e+00> : vector<4xf32>
    %68 = vector.multi_reduction <add>, %67, %cst_15 [1] : vector<4x256xf32> to vector<4xf32>
    %69 = vector.shape_cast %68 : vector<4xf32> to vector<4x1xf32>
    %cst_16 = arith.constant 2.560000e+02 : f32
    %70 = vector.broadcast %cst_16 : f32 to vector<4x1xf32>
    %71 = arith.divf %69, %70 : vector<4x1xf32>
    %72 = vector.broadcast %71 : vector<4x1xf32> to vector<4x2xf32>
    %73 = arith.mulf %0, %72 : vector<4x2xf32>
    %cst_17 = arith.constant dense<0.000000e+00> : vector<2xf32>
    %74 = vector.multi_reduction <add>, %73, %cst_17 [0] : vector<4x2xf32> to vector<2xf32>
    %75 = vector.shape_cast %74 : vector<2xf32> to vector<1x2xf32>
    %76 = arith.addf %75, %5 : vector<1x2xf32>
    %cst_18 = arith.constant 0.000000e+00 : f32
    %77 = vector.broadcast %cst_18 : f32 to vector<1x2xf32>
    %78 = arith.maximumf %76, %77 : vector<1x2xf32>
    %79 = vector.broadcast %78 : vector<1x2xf32> to vector<4x2xf32>
    %80 = arith.mulf %1, %79 : vector<4x2xf32>
    %cst_19 = arith.constant dense<0.000000e+00> : vector<4xf32>
    %81 = vector.multi_reduction <add>, %80, %cst_19 [1] : vector<4x2xf32> to vector<4xf32>
    %82 = vector.shape_cast %81 : vector<4xf32> to vector<4x1xf32>
    %83 = arith.addf %82, %3 : vector<4x1xf32>
    %84 = arith.negf %83 : vector<4x1xf32>
    %85 = math.exp %84 : vector<4x1xf32>
    %cst_20 = arith.constant 1.000000e+00 : f32
    %86 = vector.broadcast %cst_20 : f32 to vector<4x1xf32>
    %87 = arith.addf %86, %85 : vector<4x1xf32>
    %88 = arith.divf %86, %87 : vector<4x1xf32>
    %89 = vector.extract_strided_slice %2 {offsets = [0, 0], sizes = [4, 1], strides = [1, 1]} : vector<4x4xf32> to vector<4x1xf32>
    %90 = vector.extract_strided_slice %88 {offsets = [0, 0], sizes = [1, 1], strides = [1, 1]} : vector<4x1xf32> to vector<1x1xf32>
    %91 = vector.broadcast %90 : vector<1x1xf32> to vector<4x1xf32>
    %92 = arith.mulf %89, %91 : vector<4x1xf32>
    %93 = vector.extract_strided_slice %67 {offsets = [0, 0], sizes = [1, 256], strides = [1, 1]} : vector<4x256xf32> to vector<1x256xf32>
    %94 = vector.broadcast %92 : vector<4x1xf32> to vector<4x256xf32>
    %95 = vector.broadcast %93 : vector<1x256xf32> to vector<4x256xf32>
    %96 = arith.mulf %94, %95 : vector<4x256xf32>
    %97 = vector.broadcast %4 : vector<4x1xf32> to vector<4x256xf32>
    %98 = arith.addf %96, %97 : vector<4x256xf32>
    %99 = vector.extract_strided_slice %2 {offsets = [0, 1], sizes = [4, 1], strides = [1, 1]} : vector<4x4xf32> to vector<4x1xf32>
    %100 = vector.extract_strided_slice %88 {offsets = [1, 0], sizes = [1, 1], strides = [1, 1]} : vector<4x1xf32> to vector<1x1xf32>
    %101 = vector.broadcast %100 : vector<1x1xf32> to vector<4x1xf32>
    %102 = arith.mulf %99, %101 : vector<4x1xf32>
    %103 = vector.extract_strided_slice %67 {offsets = [1, 0], sizes = [1, 256], strides = [1, 1]} : vector<4x256xf32> to vector<1x256xf32>
    %104 = vector.broadcast %102 : vector<4x1xf32> to vector<4x256xf32>
    %105 = vector.broadcast %103 : vector<1x256xf32> to vector<4x256xf32>
    %106 = arith.mulf %104, %105 : vector<4x256xf32>
    %107 = arith.addf %98, %106 : vector<4x256xf32>
    %108 = vector.extract_strided_slice %2 {offsets = [0, 2], sizes = [4, 1], strides = [1, 1]} : vector<4x4xf32> to vector<4x1xf32>
    %109 = vector.extract_strided_slice %88 {offsets = [2, 0], sizes = [1, 1], strides = [1, 1]} : vector<4x1xf32> to vector<1x1xf32>
    %110 = vector.broadcast %109 : vector<1x1xf32> to vector<4x1xf32>
    %111 = arith.mulf %108, %110 : vector<4x1xf32>
    %112 = vector.extract_strided_slice %67 {offsets = [2, 0], sizes = [1, 256], strides = [1, 1]} : vector<4x256xf32> to vector<1x256xf32>
    %113 = vector.broadcast %111 : vector<4x1xf32> to vector<4x256xf32>
    %114 = vector.broadcast %112 : vector<1x256xf32> to vector<4x256xf32>
    %115 = arith.mulf %113, %114 : vector<4x256xf32>
    %116 = arith.addf %107, %115 : vector<4x256xf32>
    %117 = vector.extract_strided_slice %2 {offsets = [0, 3], sizes = [4, 1], strides = [1, 1]} : vector<4x4xf32> to vector<4x1xf32>
    %118 = vector.extract_strided_slice %88 {offsets = [3, 0], sizes = [1, 1], strides = [1, 1]} : vector<4x1xf32> to vector<1x1xf32>
    %119 = vector.broadcast %118 : vector<1x1xf32> to vector<4x1xf32>
    %120 = arith.mulf %117, %119 : vector<4x1xf32>
    %121 = vector.extract_strided_slice %67 {offsets = [3, 0], sizes = [1, 256], strides = [1, 1]} : vector<4x256xf32> to vector<1x256xf32>
    %122 = vector.broadcast %120 : vector<4x1xf32> to vector<4x256xf32>
    %123 = vector.broadcast %121 : vector<1x256xf32> to vector<4x256xf32>
    %124 = arith.mulf %122, %123 : vector<4x256xf32>
    %125 = arith.addf %116, %124 : vector<4x256xf32>
    %c4_21 = arith.constant 4 : index
    %c0_22 = arith.constant 0 : index
    %126 = vector.load %arg2[%c4_21, %c0_22] : memref<8x256xf32, #tpu.memory_space<vmem>>, vector<4x256xf32>
    tpu.vector_store %arg2[%c4_21, %c0_22], %125 {strides = array<i32>} : memref<8x256xf32, #tpu.memory_space<vmem>>, vector<4x256xf32>,
    return
  }
}

</mosaic_0001>

<llo_original>
// kernel: tpu_custom_call.1
$region0: #{tpu_custom_call.1}
  #allocation0 [shape = 'u32[]', space=smem, size = 0x4, offset = 0x4, fixed_abs, tag = 'smem constant byte address 0x4 - core index']
  #allocation1 [shape = 'u32[144,128]{1,0:T(1,128)}', space=vmem, size = 0x12000, scoped, tag = 'internal scratch']
  %s0 = inlined_call_operand.hbm [shape: f32[8,128], index: 0, kind: input, shape index: {}]
  %s1 = inlined_call_operand.hbm [shape: f32[8,256], index: 1, kind: input, shape index: {}]
  %s2 = inlined_call_operand.hbm [shape: f32[8,256], index: 2, kind: output, shape index: {}]
  %s3 = sld [smem:[#allocation0]]
  $region26: #{tpu_custom_call.1} parent=0
    _
  %s5 = ssub.s32 1, %s3
  %s6 = scalar_select 0, %s5, %s3
  $region1: #{tpu_custom_call.1} parent=0
    #allocation2 [shape = 'u8[4096]{0}', space=vmem, size = 0x1000, scoped, tag = 'input window, operand 0, single buffered']
    #allocation3 [shape = 's32[1]{0}', space=sflag, size = 0x4, scoped, tag = 'scoped memory for tpu_custom_call.1']
    #allocation4 [shape = 's32[1]{0}', space=sflag, size = 0x4, scoped, tag = 'scoped memory for tpu_custom_call.1']
    #allocation5 [shape = 'u8[8192]{0}', space=vmem, size = 0x2000, scoped, tag = 'input window, operand 1, single buffered']
    #allocation6 [shape = 's32[1]{0}', space=sflag, size = 0x4, scoped, tag = 'scoped memory for tpu_custom_call.1']
    #allocation7 [shape = 'u8[8192]{0}', space=vmem, size = 0x2000, scoped, tag = 'output window, operand 0, single buffered']
    %7 = vsyncpa [#allocation3], 0
    %8 = vsyncpa [#allocation6], 0
    %9 = vsyncpa [#allocation4], 0
    // Predicated region
    $region2: #{tpu_custom_call.1} parent=1 // pred_check
      _
    $region3: #{tpu_custom_call.1} parent=1 // pred_check_branch
      %11 = sbr.rel (0) target = $region5
    $region4: #{tpu_custom_call.1} parent=1 // pred_region
      %s13 = ssub.s32 128, 128
      %14 = vsyncadd [#allocation3], %s13
      %s16 = sshll.u32 [#allocation2], 4
      %s17 = int_to_ptr.vmem [resolvable:$true] %s16
      %19 = dma.hbm_to_vmem [thread:$0]  %s0, 128, %s17, [#allocation3]
    $region5: #{tpu_custom_call.1} parent=1 // pred_fallthru
      _
    // Predicated region
    $region6: #{tpu_custom_call.1} parent=1 // pred_check
      _
    $region7: #{tpu_custom_call.1} parent=1 // pred_check_branch
      %21 = sbr.rel (0) target = $region9
    $region8: #{tpu_custom_call.1} parent=1 // pred_region
      %s23 = ssub.s32 256, 256
      %24 = vsyncadd [#allocation6], %s23
      %s26 = sshll.u32 [#allocation5], 4
      %s27 = int_to_ptr.vmem [resolvable:$true] %s26
      %29 = dma.hbm_to_vmem [thread:$0]  %s1, 256, %s27, [#allocation6]
    $region9: #{tpu_custom_call.1} parent=1 // pred_fallthru
      _
    // Predicated region
    $region10: #{tpu_custom_call.1} parent=1 // pred_check
      _
    $region11: #{tpu_custom_call.1} parent=1 // pred_check_branch
      %31 = sbr.rel (0) target = $region13
    $region12: #{tpu_custom_call.1} parent=1 // pred_region
      %32 = dma.done [#allocation3], 128
    $region13: #{tpu_custom_call.1} parent=1 // pred_fallthru
      _
    // Predicated region
    $region14: #{tpu_custom_call.1} parent=1 // pred_check
      _
    $region15: #{tpu_custom_call.1} parent=1 // pred_check_branch
      %34 = sbr.rel (0) target = $region17
    $region16: #{tpu_custom_call.1} parent=1 // pred_region
      %35 = dma.done [#allocation6], 256
    $region17: #{tpu_custom_call.1} parent=1 // pred_fallthru
      _
    %v36 = vld [vmem:[#allocation2] sm:$0xf]
    %v37 = vld [vmem:[#allocation2] sm:$0x1]
    %v38 = vld [vmem:[#allocation5] sm:$0xff]
    %v39 = vld [vmem:[#allocation5 + $0x8] sm:$0xff]
    %vm40 = vcmask 1043456
    %v41 = vsel %vm40, %v38, 0.0
    %v42 = vsel %vm40, %v39, 0.0
    %v43 = vadd.f32 %v41, %v42
    %44 = vadd.xlane.f32.xlu0 %v43
    %v45 = vpop.xlane.xlu0 %44
    %v46 = vrcp.pop 256.0
    %v47 = vmul.f32 %v45, %v46
    %v48 = vmul.f32 %v36, %v47
    %vm49 = vcmask 11264
    %v50 = vsel %vm49, %v48, 0.0
    %v51 = vrot.slane %v50, 4
    %v52 = vadd.f32 %v50, %v51
    %v53 = vrot.slane %v52, 2
    %v54 = vadd.f32 %v52, %v53
    %v55 = vrot.slane %v54, 1
    %v56 = vadd.f32 %v54, %v55
    %58 = vrot.lane.b32.xlu0 %v37, 118
    %v59 = vpop.permute.xlu0 %58
    %v61 = vadd.f32 %v56, %v59
    %v62 = vmax.f32 %v61, 0.0
    %v63 = vlaneseq
    %v64 = vshrl.u32 %v63, 7
    %v65 = vsub.s32 0, %v64
    %v66 = vrot.slane %v62, %v65
    %68 = vrot.lane.b32.xlu0 %v66, 2
    %v69 = vpop.permute.xlu0 %68
    %v71 = vmul.f32 %v36, %v69
    %73 = vrot.lane.b32.xlu0 %v71, 126
    %v74 = vpop.permute.xlu0 %73
    %v76 = vsel %vm49, %v74, 0.0
    %77 = vadd.xlane.f32.xlu0 %v76
    %v78 = vpop.xlane.xlu0 %77
    %v79 = vadd.f32 %v78, %v36
    %v80 = vxor.u32 %v79, 2147483648
    %v81 = vmul.f32 %v80, 1.442695
    %v82 = vpow.pop %v81
    %v83 = vadd.f32 %v82, 1.0
    %v84 = vrcp.pop %v83
    %v85 = vmul.f32 1.0, %v84
    %v86 = vlaneseq
    %v87 = vshrl.u32 %v86, 7
    %v88 = vsub.s32 0, %v87
    %v89 = vrot.slane %v85, %v88
    %91 = vrot.lane.b32.xlu0 %v89, 124
    %v92 = vpop.permute.xlu0 %91
    %v94 = vmul.f32 %v36, %v92
    %96 = vset.pattern.permute.xlu0 4
    %97 = vperm.xlu0 %96, %v94
    %v98 = vpop.permute.xlu0 %97
    %v100 = vlaneseq
    %v101 = vshrl.u32 %v100, 7
    %v102 = vsub.s32 0, %v101
    %v103 = vrot.slane %v38, %v102
    %v104 = vlaneseq
    %v105 = vshrl.u32 %v104, 7
    %v106 = vsub.s32 0, %v105
    %v107 = vrot.slane %v39, %v106
    %v108 = vmul.f32 %v98, %v103
    %v109 = vmul.f32 %v98, %v107
    %111 = vset.pattern.permute.xlu0 9
    %112 = vperm.xlu0 %111, %v36
    %v113 = vpop.permute.xlu0 %112
    %v115 = vadd.f32 %v108, %v113
    %v116 = vadd.f32 %v109, %v113
    %v117 = vlaneseq
    %v118 = vshrl.u32 %v117, 7
    %v119 = vsub.s32 1, %v118
    %v120 = vrot.slane %v85, %v119
    %122 = vrot.lane.b32.xlu0 %v120, 125
    %v123 = vpop.permute.xlu0 %122
    %v125 = vmul.f32 %v36, %v123
    %127 = vset.pattern.permute.xlu0 5
    %128 = vperm.xlu0 %127, %v125
    %v129 = vpop.permute.xlu0 %128
    %v131 = vlaneseq
    %v132 = vshrl.u32 %v131, 7
    %v133 = vsub.s32 1, %v132
    %v134 = vrot.slane %v38, %v133
    %v135 = vlaneseq
    %v136 = vshrl.u32 %v135, 7
    %v137 = vsub.s32 1, %v136
    %v138 = vrot.slane %v39, %v137
    %v139 = vmul.f32 %v129, %v134
    %v140 = vmul.f32 %v129, %v138
    %v141 = vadd.f32 %v115, %v139
    %v142 = vadd.f32 %v116, %v140
    %v143 = vlaneseq
    %v144 = vshrl.u32 %v143, 7
    %v145 = vsub.s32 2, %v144
    %v146 = vrot.slane %v85, %v145
    %148 = vrot.lane.b32.xlu0 %v146, 126
    %v149 = vpop.permute.xlu0 %148
    %v151 = vmul.f32 %v36, %v149
    %153 = vset.pattern.permute.xlu0 6
    %154 = vperm.xlu0 %153, %v151
    %v155 = vpop.permute.xlu0 %154
    %v157 = vlaneseq
    %v158 = vshrl.u32 %v157, 7
    %v159 = vsub.s32 2, %v158
    %v160 = vrot.slane %v38, %v159
    %v161 = vlaneseq
    %v162 = vshrl.u32 %v161, 7
    %v163 = vsub.s32 2, %v162
    %v164 = vrot.slane %v39, %v163
    %v165 = vmul.f32 %v155, %v160
    %v166 = vmul.f32 %v155, %v164
    %v167 = vadd.f32 %v141, %v165
    %v168 = vadd.f32 %v142, %v166
    %v169 = vlaneseq
    %v170 = vshrl.u32 %v169, 7
    %v171 = vsub.s32 3, %v170
    %v172 = vrot.slane %v85, %v171
    %174 = vrot.lane.b32.xlu0 %v172, 127
    %v175 = vpop.permute.xlu0 %174
    %v177 = vmul.f32 %v36, %v175
    %179 = vset.pattern.permute.xlu0 7
    %180 = vperm.xlu0 %179, %v177
    %v181 = vpop.permute.xlu0 %180
    %v183 = vlaneseq
    %v184 = vshrl.u32 %v183, 7
    %v185 = vsub.s32 3, %v184
    %v186 = vrot.slane %v38, %v185
    %v187 = vlaneseq
    %v188 = vshrl.u32 %v187, 7
    %v189 = vsub.s32 3, %v188
    %v190 = vrot.slane %v39, %v189
    %v191 = vmul.f32 %v181, %v186
    %v192 = vmul.f32 %v181, %v190
    %v193 = vadd.f32 %v167, %v191
    %v194 = vadd.f32 %v168, %v192
    %195 = vst [vmem:[#allocation7] sm:$0xf] %v193
    %196 = vst [vmem:[#allocation7 + $0x8] sm:$0xf] %v194
    %vm197 = vcmask 1047556
    %v198 = vsel %vm197, %v38, 0.0
    %v199 = vsel %vm197, %v39, 0.0
    %v200 = vadd.f32 %v198, %v199
    %201 = vadd.xlane.f32.xlu0 %v200
    %v202 = vpop.xlane.xlu0 %201
    %v203 = vmul.f32 %v202, %v46
    %v205 = vrot.slane %v203, 4
    %v207 = vmul.f32 %v36, %v205
    %v208 = vsel %vm49, %v207, 0.0
    %v209 = vrot.slane %v208, 4
    %v210 = vadd.f32 %v208, %v209
    %v211 = vrot.slane %v210, 2
    %v212 = vadd.f32 %v210, %v211
    %v213 = vrot.slane %v212, 1
    %v214 = vadd.f32 %v212, %v213
    %v215 = vadd.f32 %v214, %v59
    %v216 = vmax.f32 %v215, 0.0
    %v217 = vlaneseq
    %v218 = vshrl.u32 %v217, 7
    %v219 = vsub.s32 0, %v218
    %v220 = vrot.slane %v216, %v219
    %222 = vrot.lane.b32.xlu0 %v220, 2
    %v223 = vpop.permute.xlu0 %222
    %v225 = vmul.f32 %v36, %v223
    %227 = vrot.lane.b32.xlu0 %v225, 126
    %v228 = vpop.permute.xlu0 %227
    %v230 = vsel %vm49, %v228, 0.0
    %231 = vadd.xlane.f32.xlu0 %v230
    %v232 = vpop.xlane.xlu0 %231
    %v233 = vadd.f32 %v232, %v36
    %v234 = vxor.u32 %v233, 2147483648
    %v235 = vmul.f32 %v234, 1.442695
    %v236 = vpow.pop %v235
    %v237 = vadd.f32 %v236, 1.0
    %v238 = vrcp.pop %v237
    %v239 = vmul.f32 1.0, %v238
    %v240 = vlaneseq
    %v241 = vshrl.u32 %v240, 7
    %v242 = vsub.s32 0, %v241
    %v243 = vrot.slane %v239, %v242
    %245 = vrot.lane.b32.xlu0 %v243, 124
    %v246 = vpop.permute.xlu0 %245
    %v248 = vmul.f32 %v36, %v246
    %250 = vset.pattern.permute.xlu0 4
    %251 = vperm.xlu0 %250, %v248
    %v252 = vpop.permute.xlu0 %251
    %v254 = vlaneseq
    %v255 = vshrl.u32 %v254, 7
    %v256 = vsub.s32 4, %v255
    %v257 = vrot.slane %v38, %v256
    %v258 = vlaneseq
    %v259 = vshrl.u32 %v258, 7
    %v260 = vsub.s32 4, %v259
    %v261 = vrot.slane %v39, %v260
    %v262 = vmul.f32 %v252, %v257
    %v263 = vmul.f32 %v252, %v261
    %v264 = vadd.f32 %v262, %v113
    %v265 = vadd.f32 %v263, %v113
    %v266 = vlaneseq
    %v267 = vshrl.u32 %v266, 7
    %v268 = vsub.s32 1, %v267
    %v269 = vrot.slane %v239, %v268
    %271 = vrot.lane.b32.xlu0 %v269, 125
    %v272 = vpop.permute.xlu0 %271
    %v274 = vmul.f32 %v36, %v272
    %276 = vset.pattern.permute.xlu0 5
    %277 = vperm.xlu0 %276, %v274
    %v278 = vpop.permute.xlu0 %277
    %v280 = vlaneseq
    %v281 = vshrl.u32 %v280, 7
    %v282 = vsub.s32 5, %v281
    %v283 = vrot.slane %v38, %v282
    %v284 = vlaneseq
    %v285 = vshrl.u32 %v284, 7
    %v286 = vsub.s32 5, %v285
    %v287 = vrot.slane %v39, %v286
    %v288 = vmul.f32 %v278, %v283
    %v289 = vmul.f32 %v278, %v287
    %v290 = vadd.f32 %v264, %v288
    %v291 = vadd.f32 %v265, %v289
    %v292 = vlaneseq
    %v293 = vshrl.u32 %v292, 7
    %v294 = vsub.s32 2, %v293
    %v295 = vrot.slane %v239, %v294
    %297 = vrot.lane.b32.xlu0 %v295, 126
    %v298 = vpop.permute.xlu0 %297
    %v300 = vmul.f32 %v36, %v298
    %302 = vset.pattern.permute.xlu0 6
    %303 = vperm.xlu0 %302, %v300
    %v304 = vpop.permute.xlu0 %303
    %v306 = vlaneseq
    %v307 = vshrl.u32 %v306, 7
    %v308 = vsub.s32 6, %v307
    %v309 = vrot.slane %v38, %v308
    %v310 = vlaneseq
    %v311 = vshrl.u32 %v310, 7
    %v312 = vsub.s32 6, %v311
    %v313 = vrot.slane %v39, %v312
    %v314 = vmul.f32 %v304, %v309
    %v315 = vmul.f32 %v304, %v313
    %v316 = vadd.f32 %v290, %v314
    %v317 = vadd.f32 %v291, %v315
    %v318 = vlaneseq
    %v319 = vshrl.u32 %v318, 7
    %v320 = vsub.s32 3, %v319
    %v321 = vrot.slane %v239, %v320
    %323 = vrot.lane.b32.xlu0 %v321, 127
    %v324 = vpop.permute.xlu0 %323
    %v326 = vmul.f32 %v36, %v324
    %328 = vset.pattern.permute.xlu0 7
    %329 = vperm.xlu0 %328, %v326
    %v330 = vpop.permute.xlu0 %329
    %v332 = vlaneseq
    %v333 = vshrl.u32 %v332, 7
    %v334 = vsub.s32 7, %v333
    %v335 = vrot.slane %v38, %v334
    %v336 = vlaneseq
    %v337 = vshrl.u32 %v336, 7
    %v338 = vsub.s32 7, %v337
    %v339 = vrot.slane %v39, %v338
    %v340 = vmul.f32 %v330, %v335
    %v341 = vmul.f32 %v330, %v339
    %v342 = vadd.f32 %v316, %v340
    %v343 = vadd.f32 %v317, %v341
    %v346 = vrot.slane %v342, 4
    %v347 = vrot.slane %v343, 4
    %350 = vst [vmem:[#allocation7] sm:$0xf0] %v346
    %351 = vst [vmem:[#allocation7 + $0x8] sm:$0xf0] %v347
    // Predicated region
    $region18: #{tpu_custom_call.1} parent=1 // pred_check
      _
    $region19: #{tpu_custom_call.1} parent=1 // pred_check_branch
      %353 = sbr.rel (0) target = $region21
    $region20: #{tpu_custom_call.1} parent=1 // pred_region
      %s355 = ssub.s32 256, 256
      %356 = vsyncadd [#allocation4], %s355
      %s358 = sshll.u32 [#allocation7], 4
      %s359 = int_to_ptr.vmem [resolvable:$true] %s358
      %361 = dma.vmem_to_hbm [thread:$0]  %s359, 256, %s2, [#allocation4]
    $region21: #{tpu_custom_call.1} parent=1 // pred_fallthru
      _
    // Predicated region
    $region22: #{tpu_custom_call.1} parent=1 // pred_check
      _
    $region23: #{tpu_custom_call.1} parent=1 // pred_check_branch
      %363 = sbr.rel (0) target = $region25
    $region24: #{tpu_custom_call.1} parent=1 // pred_region
      %364 = dma.done [#allocation4], 256
    $region25: #{tpu_custom_call.1} parent=1 // pred_fallthru
      _
    %365 = vsyncpa [#allocation3], 1
    %366 = vsyncpa [#allocation6], 1
    %367 = vsyncpa [#allocation4], 1

</llo_original>
